<compile_context>
chip_gen: v7x
topology: tpu7x:2x2x1
jax: 0.10.0
libtpu: 0.0.40
codegen_flags: <defaults>
</compile_context>

<pallas_src>
from functools import partial

import numpy as np
import jax
import jax.numpy as jnp
from jax import lax
from jax.experimental import pallas as pl
from jax.experimental.pallas import tpu as pltpu


# --------------------------------------------------------------------------
# Kernel
# --------------------------------------------------------------------------
def homo_kernel(x_ref,                      # (tb, D_in)  f32, natural layout
                w1_ref,                     # (H, D_in)   bf16 (scale folded)
                w234_ref,                   # (3, H, H)   bf16 (scale folded)
                w5_ref,                     # (D_out, H)  bf16
                bias_ref,                   # (H, 5)      f32: b1..b4 scaled, col4=b5
                oT_ref,                     # (D_out, tb) f32, batch on lanes
                *, act_dtype, d_out):
    bias = bias_ref[...]                                   # (H, 5) f32
    x = x_ref[...].astype(jnp.bfloat16)                    # (tb, D_in)

    # First layer: contract W1 axis 1 with x axis 1 -> (H, tb) directly, so the
    # batch lands on the lane axis without any host-side transpose.  The
    # implied rhs transpose rides the otherwise-idle XLU slot.
    z1 = lax.dot_general(w1_ref[...], x,
                         dimension_numbers=(((1,), (1,)), ((), ())),
                         preferred_element_type=jnp.float32) + bias[:, 0:1]

    def lin(w, h, b):
        # bf16 MXU operands, f32 accumulation; bias (out, 1) broadcasts over lanes.
        return jnp.dot(w, h.astype(jnp.bfloat16),
                       preferred_element_type=jnp.float32) + b

    def act(z):
        # tanh / residuals in act_dtype: bf16 on v6e/v7x (bf16 EUP/VPU), f32 on v5e.
        return jnp.tanh(z.astype(act_dtype))

    y1 = act(z1)
    y2 = act(lin(w234_ref[0], y1, bias[:, 1:2]))
    y3 = act(lin(w234_ref[1], y2, bias[:, 2:3])) + y1
    y4 = act(lin(w234_ref[2], y3, bias[:, 3:4])) + y2

    b5 = bias[0:d_out, 4:5]                                # (D_out, 1)
    oT_ref[...] = lin(w5_ref[...], y4, b5).astype(oT_ref.dtype)


# --------------------------------------------------------------------------
# Wrapper
# --------------------------------------------------------------------------
def _choose_tile(N, max_tb=8192):
    """Batch (lane) tile: multiple of 128, as large as the VMEM budget allows
    (amortizes ~0.35us/step overhead), aiming for an even grid with >=4 steps
    so both v7x TensorCores get work with overlap."""
    n128 = pl.cdiv(N, 128)
    if n128 <= 1:
        return 128
    target = 2 if n128 < 4 else (4 if n128 < 16 else 8)
    tb = int(min(128 * pl.cdiv(n128, target), max_tb))
    # Prefer an even grid (v7x has 2 TCs); shrink tb a lane-chunk at a time.
    grid = pl.cdiv(N, tb)
    while grid > 1 and grid % 2 == 1 and tb > 128:
        tb -= 128
        grid = pl.cdiv(N, tb)
    return tb


def default_act_dtype():
    """bf16 activations on chips with a bf16 VPU/EUP (v6e/v7x); f32 otherwise."""
    try:
        kind = jax.devices()[0].device_kind.lower()
    except Exception:
        return jnp.float32
    if "v6" in kind or "v7" in kind:
        return jnp.bfloat16
    return jnp.float32


@partial(jax.jit, static_argnames=("tb", "act_dtype"))
def _homo_pallas(x, w1, w234, w5, bias, *, tb, act_dtype):
    N, D_in = x.shape
    H = w1.shape[0]
    D_out = w5.shape[0]
    grid = pl.cdiv(N, tb)   # boundary block: padded reads, dropped OOB writes

    kernel = partial(homo_kernel, act_dtype=act_dtype, d_out=D_out)

    yT = pl.pallas_call(
        kernel,
        out_shape=jax.ShapeDtypeStruct((D_out, N), jnp.float32),
        grid_spec=pltpu.PrefetchScalarGridSpec(
            num_scalar_prefetch=0,
            grid=(grid,),
            in_specs=[
                pl.BlockSpec((tb, D_in), lambda i: (i, 0)),    # x tile, natural layout
                pl.BlockSpec((H, D_in), lambda i: (0, 0)),     # W1
                pl.BlockSpec((3, H, H), lambda i: (0, 0, 0)),  # W2..W4 packed
                pl.BlockSpec((D_out, H), lambda i: (0, 0)),    # W5
                pl.BlockSpec((H, 5), lambda i: (0, 0)),        # b1..b4 + b5 packed
            ],
            out_specs=pl.BlockSpec((D_out, tb), lambda i: (0, i)),
        ),
        compiler_params=pltpu.CompilerParams(
            dimension_semantics=("parallel",),
            vmem_limit_bytes=32 * 1024 * 1024,
        ),
    )(x, w1, w234, w5, bias)

    # Lane-dense (D_out, N) stores are the big lever; one transpose back to the
    # module's (N, D_out) layout, fused under jit.
    return yT.T


def homo_forward(x, kparams, *, act_dtype=None, max_tb=8192):
    """x: [N, D_in] f32.  kparams: output of prepare_params()."""
    if act_dtype is None:
        act_dtype = default_act_dtype()
    tb = _choose_tile(int(x.shape[0]), max_tb)
    return _homo_pallas(x, kparams["w1"], kparams["w234"], kparams["w5"],
                        kparams["bias"], tb=tb, act_dtype=act_dtype)


# --------------------------------------------------------------------------
# Parameters (torch-style init, torch weight layout [out, in])
# --------------------------------------------------------------------------
def make_params(key, D_in, H, D_out):
    ks = jax.random.split(key, 10)
    def w(k, fan_out, fan_in, std):
        return (std * jax.random.normal(k, (fan_out, fan_in))).astype(jnp.float32)
    def b(k, fan_out):
        return jax.random.normal(k, (fan_out,)).astype(jnp.float32)   # std=1
    return {
        "w1": w(ks[0], H, D_in, np.sqrt(2.0 / (D_in + H))), "b1": b(ks[1], H),
        "w2": w(ks[2], H, H,    np.sqrt(2.0 / (H + H))),    "b2": b(ks[3], H),
        "w3": w(ks[4], H, H,    np.sqrt(2.0 / (H + H))),    "b3": b(ks[5], H),
        "w4": w(ks[6], H, H,    np.sqrt(2.0 / (H + H))),    "b4": b(ks[7], H),
        "w5": w(ks[8], D_out, H, np.sqrt(2.0 / (H + D_out))), "b5": b(ks[9], D_out),
    }


def prepare_params(params, a1):
    """One-time transform: fold the n*a1 scale into L1..L4, pack W2..W4 and all
    biases, cast MXU operands to bf16 (f32 accumulation happens in the kernel)."""
    H, _ = params["w1"].shape
    D_out = params["w5"].shape[0]
    assert D_out <= H, "bias packing assumes D_out <= H"
    n = jnp.float32(1.0) / a1            # torch: self.n = 1 / self.a1.data
    s = (n * a1).astype(jnp.float32)     # ~1.0 numerically, kept explicit
    fold = lambda w: (s * w).astype(jnp.bfloat16)
    b5col = jnp.zeros((H,), jnp.float32).at[:D_out].set(params["b5"])
    bias = jnp.stack([s * params["b1"], s * params["b2"], s * params["b3"],
                      s * params["b4"], b5col], axis=1).astype(jnp.float32)
    return {
        "w1": fold(params["w1"]),                                   # (H, D_in)
        "w234": jnp.stack([fold(params["w2"]), fold(params["w3"]),
                           fold(params["w4"])]),                    # (3, H, H)
        "w5": params["w5"].astype(jnp.bfloat16),                    # (D_out, H)
        "bias": bias,                                               # (H, 5)
    }


# --------------------------------------------------------------------------
# Pure-JAX f32 reference (module semantics)
# --------------------------------------------------------------------------
def reference_forward(x, params, a1):
    n = jnp.float32(1.0) / a1
    s = n * a1
    lin = lambda h, wn, bn: h @ params[wn].T + params[bn]
    y1 = jnp.tanh(s * lin(x,  "w1", "b1"))
    y2 = jnp.tanh(s * lin(y1, "w2", "b2"))
    y3 = jnp.tanh(s * lin(y2, "w3", "b3")) + y1
    y4 = jnp.tanh(s * lin(y3, "w4", "b4")) + y2
    return lin(y4, "w5", "b5")


# --------------------------------------------------------------------------
if __name__ == "__main__":
    D_in, H, D_out = 8, 32, 4
    key = jax.random.PRNGKey(0)
    kx, kp = jax.random.split(key)

    params = make_params(kp, D_in, H, D_out)
    a1 = jnp.float32(0.1)
    kparams = prepare_params(params, a1)

    act_dtype = default_act_dtype()
    # bf16 MXU weights need the loosened tolerance; bf16 activations (v6e/v7x)
    # need a little more headroom after 4 layers of tanh + residuals.
    rtol, atol = (3e-2, 1e-1) if act_dtype == jnp.bfloat16 else (2e-2, 5e-2)

    # An aligned batch (even grid of 4) and a ragged one exercising the
    # Pallas boundary-block path (grid=2, last block partially out of bounds).
    for N in (1024, 200):
        x = jax.random.normal(jax.random.fold_in(kx, N), (N, D_in),
                              dtype=jnp.float32)
        y = jax.block_until_ready(homo_forward(x, kparams, act_dtype=act_dtype))
        y_ref = reference_forward(x, params, a1)
        np.testing.assert_allclose(np.asarray(y), np.asarray(y_ref),
                                   rtol=rtol, atol=atol)

    print("KERNEL_OK")
</pallas_src>

<mosaic_0001>
module attributes {stable_mosaic.version = 11 : i64} {
  func.func @homo_kernel(%arg0: i32, %arg1: memref<256x8xf32, #tpu.memory_space<vmem>>, %arg2: memref<32x8xbf16, #tpu.memory_space<vmem>>, %arg3: memref<3x32x32xbf16, #tpu.memory_space<vmem>>, %arg4: memref<4x32xbf16, #tpu.memory_space<vmem>>, %arg5: memref<32x5xf32, #tpu.memory_space<vmem>>, %arg6: memref<4x256xf32, #tpu.memory_space<vmem>>) attributes {dimension_semantics = [#tpu.dimension_semantics<parallel>], iteration_bounds = array<i64: 4>, scalar_prefetch = 0 : i64, scratch_operands = 0 : i64, tpu.core_type = #tpu.core_type<tc>, window_params = [{transform_indices = @transform_0, window_bounds = array<i64: 256, 8>}, {pipeline_mode = #tpu.pipeline_mode<synchronous>, transform_indices = @transform_1, window_bounds = array<i64: 32, 8>}, {pipeline_mode = #tpu.pipeline_mode<synchronous>, transform_indices = @transform_2, window_bounds = array<i64: 3, 32, 32>}, {pipeline_mode = #tpu.pipeline_mode<synchronous>, transform_indices = @transform_3, window_bounds = array<i64: 4, 32>}, {pipeline_mode = #tpu.pipeline_mode<synchronous>, transform_indices = @transform_4, window_bounds = array<i64: 32, 5>}, {transform_indices = @transform_5, window_bounds = array<i64: 4, 256>}]} {
    %c0 = arith.constant 0 : index
    %c0_0 = arith.constant 0 : index
    %0 = vector.load %arg5[%c0, %c0_0] : memref<32x5xf32, #tpu.memory_space<vmem>>, vector<32x5xf32>
    %c0_1 = arith.constant 0 : index
    %c0_2 = arith.constant 0 : index
    %1 = vector.load %arg1[%c0_1, %c0_2] : memref<256x8xf32, #tpu.memory_space<vmem>>, vector<256x8xf32>
    %2 = arith.truncf %1 : vector<256x8xf32> to vector<256x8xbf16>
    %c0_3 = arith.constant 0 : index
    %c0_4 = arith.constant 0 : index
    %3 = vector.load %arg2[%c0_3, %c0_4] : memref<32x8xbf16, #tpu.memory_space<vmem>>, vector<32x8xbf16>
    %cst = arith.constant dense<0.000000e+00> : vector<32x256xf32>
    %4 = tpu.matmul %3, %2, %cst {dimension_numbers = #tpu.dot_dimension_numbers<[1], [1], [0], [0], [0, 0, 1, 0], [], []>} : vector<32x8xbf16>, vector<256x8xbf16>, vector<32x256xf32> -> vector<32x256xf32>
    %5 = vector.extract_strided_slice %0 {offsets = [0, 0], sizes = [32, 1], strides = [1, 1]} : vector<32x5xf32> to vector<32x1xf32>
    %6 = vector.broadcast %5 : vector<32x1xf32> to vector<32x256xf32>
    %7 = arith.addf %4, %6 : vector<32x256xf32>
    %8 = math.tanh %7 : vector<32x256xf32>
    %c0_5 = arith.constant 0 : index
    %c0_6 = arith.constant 0 : index
    %c0_7 = arith.constant 0 : index
    %9 = vector.load %arg3[%c0_5, %c0_6, %c0_7] : memref<3x32x32xbf16, #tpu.memory_space<vmem>>, vector<1x32x32xbf16>
    %10 = vector.shape_cast %9 : vector<1x32x32xbf16> to vector<32x32xbf16>
    %11 = vector.extract_strided_slice %0 {offsets = [0, 1], sizes = [32, 1], strides = [1, 1]} : vector<32x5xf32> to vector<32x1xf32>
    %12 = arith.truncf %8 : vector<32x256xf32> to vector<32x256xbf16>
    %cst_8 = arith.constant dense<0.000000e+00> : vector<32x256xf32>
    %13 = tpu.matmul %10, %12, %cst_8 {dimension_numbers = #tpu.dot_dimension_numbers<[1], [0], [0], [1], [0, 0, 1, 1], [], []>} : vector<32x32xbf16>, vector<32x256xbf16>, vector<32x256xf32> -> vector<32x256xf32>
    %14 = vector.broadcast %11 : vector<32x1xf32> to vector<32x256xf32>
    %15 = arith.addf %13, %14 : vector<32x256xf32>
    %16 = math.tanh %15 : vector<32x256xf32>
    %c1 = arith.constant 1 : index
    %c0_9 = arith.constant 0 : index
    %c0_10 = arith.constant 0 : index
    %17 = vector.load %arg3[%c1, %c0_9, %c0_10] : memref<3x32x32xbf16, #tpu.memory_space<vmem>>, vector<1x32x32xbf16>
    %18 = vector.shape_cast %17 : vector<1x32x32xbf16> to vector<32x32xbf16>
    %19 = vector.extract_strided_slice %0 {offsets = [0, 2], sizes = [32, 1], strides = [1, 1]} : vector<32x5xf32> to vector<32x1xf32>
    %20 = arith.truncf %16 : vector<32x256xf32> to vector<32x256xbf16>
    %cst_11 = arith.constant dense<0.000000e+00> : vector<32x256xf32>
    %21 = tpu.matmul %18, %20, %cst_11 {dimension_numbers = #tpu.dot_dimension_numbers<[1], [0], [0], [1], [0, 0, 1, 1], [], []>} : vector<32x32xbf16>, vector<32x256xbf16>, vector<32x256xf32> -> vector<32x256xf32>
    %22 = vector.broadcast %19 : vector<32x1xf32> to vector<32x256xf32>
    %23 = arith.addf %21, %22 : vector<32x256xf32>
    %24 = math.tanh %23 : vector<32x256xf32>
    %25 = arith.addf %24, %8 : vector<32x256xf32>
    %c2 = arith.constant 2 : index
    %c0_12 = arith.constant 0 : index
    %c0_13 = arith.constant 0 : index
    %26 = vector.load %arg3[%c2, %c0_12, %c0_13] : memref<3x32x32xbf16, #tpu.memory_space<vmem>>, vector<1x32x32xbf16>
    %27 = vector.shape_cast %26 : vector<1x32x32xbf16> to vector<32x32xbf16>
    %28 = vector.extract_strided_slice %0 {offsets = [0, 3], sizes = [32, 1], strides = [1, 1]} : vector<32x5xf32> to vector<32x1xf32>
    %29 = arith.truncf %25 : vector<32x256xf32> to vector<32x256xbf16>
    %cst_14 = arith.constant dense<0.000000e+00> : vector<32x256xf32>
    %30 = tpu.matmul %27, %29, %cst_14 {dimension_numbers = #tpu.dot_dimension_numbers<[1], [0], [0], [1], [0, 0, 1, 1], [], []>} : vector<32x32xbf16>, vector<32x256xbf16>, vector<32x256xf32> -> vector<32x256xf32>
    %31 = vector.broadcast %28 : vector<32x1xf32> to vector<32x256xf32>
    %32 = arith.addf %30, %31 : vector<32x256xf32>
    %33 = math.tanh %32 : vector<32x256xf32>
    %34 = arith.addf %33, %16 : vector<32x256xf32>
    %35 = vector.extract_strided_slice %0 {offsets = [0, 4], sizes = [4, 1], strides = [1, 1]} : vector<32x5xf32> to vector<4x1xf32>
    %c0_15 = arith.constant 0 : index
    %c0_16 = arith.constant 0 : index
    %36 = vector.load %arg4[%c0_15, %c0_16] : memref<4x32xbf16, #tpu.memory_space<vmem>>, vector<4x32xbf16>
    %37 = arith.truncf %34 : vector<32x256xf32> to vector<32x256xbf16>
    %cst_17 = arith.constant dense<0.000000e+00> : vector<4x256xf32>
    %38 = tpu.matmul %36, %37, %cst_17 {dimension_numbers = #tpu.dot_dimension_numbers<[1], [0], [0], [1], [0, 0, 1, 1], [], []>} : vector<4x32xbf16>, vector<32x256xbf16>, vector<4x256xf32> -> vector<4x256xf32>
    %39 = vector.broadcast %35 : vector<4x1xf32> to vector<4x256xf32>
    %40 = arith.addf %38, %39 : vector<4x256xf32>
    %c0_18 = arith.constant 0 : index
    %c0_19 = arith.constant 0 : index
    %41 = vector.load %arg6[%c0_18, %c0_19] : memref<4x256xf32, #tpu.memory_space<vmem>>, vector<4x256xf32>
    tpu.vector_store %arg6[%c0_18, %c0_19], %40 {strides = array<i32>} : memref<4x256xf32, #tpu.memory_space<vmem>>, vector<4x256xf32>,
    return
  }
  func.func @transform_0(%arg0: i32) -> (i32, i32) {
    %c0_i32 = arith.constant 0 : i32
    %c0_i32_0 = arith.constant 0 : i32
    return %arg0, %c0_i32 : i32, i32
  }
  func.func @transform_1(%arg0: i32) -> (i32, i32) {
    %c0_i32 = arith.constant 0 : i32
    %c0_i32_0 = arith.constant 0 : i32
    %c0_i32_1 = arith.constant 0 : i32
    return %c0_i32, %c0_i32_0 : i32, i32
  }
  func.func @transform_2(%arg0: i32) -> (i32, i32, i32) {
    %c0_i32 = arith.constant 0 : i32
    %c0_i32_0 = arith.constant 0 : i32
    %c0_i32_1 = arith.constant 0 : i32
    %c0_i32_2 = arith.constant 0 : i32
    return %c0_i32, %c0_i32_0, %c0_i32_1 : i32, i32, i32
  }
  func.func @transform_3(%arg0: i32) -> (i32, i32) {
    %c0_i32 = arith.constant 0 : i32
    %c0_i32_0 = arith.constant 0 : i32
    %c0_i32_1 = arith.constant 0 : i32
    return %c0_i32, %c0_i32_0 : i32, i32
  }
  func.func @transform_4(%arg0: i32) -> (i32, i32) {
    %c0_i32 = arith.constant 0 : i32
    %c0_i32_0 = arith.constant 0 : i32
    %c0_i32_1 = arith.constant 0 : i32
    return %c0_i32, %c0_i32_0 : i32, i32
  }
  func.func @transform_5(%arg0: i32) -> (i32, i32) {
    %c0_i32 = arith.constant 0 : i32
    %c0_i32_0 = arith.constant 0 : i32
    return %c0_i32, %arg0 : i32, i32
  }
}

</mosaic_0001>

<llo_original>
// kernel: _homo_pallas.1
$region0: #{_homo_pallas.1}
  #allocation0 [shape = 'u32[]', space=smem, size = 0x4, offset = 0x4, fixed_abs, tag = 'smem constant byte address 0x4 - core index']
  #allocation1 [shape = 'u32[144,128]{1,0:T(1,128)}', space=vmem, size = 0x12000, scoped, tag = 'internal scratch']
  %s0 = inlined_call_operand.vmem [shape: f32[1024,8], index: 0, kind: input, shape index: {}]
  %s1 = inlined_call_operand.vmem [shape: bf16[32,8], index: 1, kind: input, shape index: {}]
  %s2 = inlined_call_operand.vmem [shape: bf16[3,32,32], index: 2, kind: input, shape index: {}]
  %s3 = inlined_call_operand.vmem [shape: bf16[4,32], index: 3, kind: input, shape index: {}]
  %s4 = inlined_call_operand.vmem [shape: f32[32,5], index: 4, kind: input, shape index: {}]
  %s5 = inlined_call_operand.hbm [shape: f32[4,1024], index: 5, kind: output, shape index: {}]
  %s6 = sld [smem:[#allocation0]]
  $region53: #{_homo_pallas.1} parent=0
    _
  %s8 = ssub.s32 1, %s6
  %s9 = scalar_select 0, %s8, %s6
  $region1: #{_homo_pallas.1} parent=0
    #allocation2 [shape = 'u8[8192]{0}', space=vmem, size = 0x2000, scoped, tag = 'output window, operand 0']
    #allocation3 [shape = 's32[2]{0}', space=sflag, size = 0x8, scoped, tag = 'scoped memory for _homo_pallas.1']
    %10 = vsyncpa [#allocation3], 0
    %s11 = scalar_lea.sflag [#allocation3], 1
    %12 = vsyncpa %s11, 0
    loop: start=0, step=1, limit=6
    $region2: #{_homo_pallas.1} parent=1 // loop_pre_header
      _
    $region3: #{_homo_pallas.1} parent=1 // loop_header
      %s14 = sphi 0, %s18
      %p15 = scmp.ge.s32.totalorder %s14, 6
      %s24 = sphi 0, %s26
      %s27 = sphi 0, %s24
      %s28 = sphi 0, %s27
      %s44 = sphi 0, %s28
      %s48 = sphi 0, %s48
      %s50 = sphi 0, %s48
      %s51 = sphi 0, %s50
      %s65 = sphi 0, %s51
      %s69 = sphi 0, %s69
      %s71 = sphi 0, %s69
      %s72 = sphi 0, %s71
      %s86 = sphi 0, %s72
      %s90 = sphi 0, %s90
      %s92 = sphi 0, %s90
      %s93 = sphi 0, %s92
      %s107 = sphi 0, %s93
      %s111 = sphi 0, %s111
      %s113 = sphi 0, %s111
      %s114 = sphi 0, %s113
      %s128 = sphi 0, %s114
      %s134 = sphi 0, %s136
      %s137 = sphi 0, %s134
      %s138 = sphi 0, %s137
      %s154 = sphi 0, %s138
    $region4: #{_homo_pallas.1} parent=1 // loop_header_branch
      %17 = sbr.rel (%p15) target = $region8
    $region5: #{_homo_pallas.1} parent=1 // loop_body
      %s19 = ssub.s32 %s14, 1
      %s20 = ssub.s32 %s14, 2
      %s21 = sadd.s32 %s14, 1
      %s22 = ssub.s32 %s14, %s21
      %p23 = scmp.eq.s32.totalorder %s22, 0
      %s25 = sadd.s32 %s24, 1
      %s26 = scalar_select %p23, %s24, %s25
      %p29 = pneg %p23
      %p30 = scmp.eq.s32.totalorder %s14, 3
      %p31 = por %p29, %p30
      %p32 = scmp.ne.s32.totalorder %s24, %s27
      %p33 = scmp.eq.s32.totalorder %s14, 0
      %p34 = por %p32, %p33
      %p35 = scmp.ne.s32.totalorder %s24, %s27
      %p36 = scmp.eq.s32.totalorder %s19, 3
      %p37 = por %p35, %p36
      %p38 = scmp.ne.s32.totalorder %s27, %s28
      %p39 = scmp.eq.s32.totalorder %s19, 0
      %p40 = por %p38, %p39
      %p41 = scmp.ne.s32.totalorder %s27, %s28
      %p42 = scmp.eq.s32.totalorder %s20, 3
      %p43 = por %p41, %p42
      %p45 = scmp.ne.s32.totalorder %s28, %s44
      %p46 = scmp.eq.s32.totalorder %s20, 0
      %p47 = por %p45, %p46
      %s49 = sadd.s32 %s48, 1
      %p52 = scmp.eq.s32.totalorder %s14, 3
      %p53 = scmp.ne.s32.totalorder %s48, %s50
      %p54 = scmp.eq.s32.totalorder %s14, 0
      %p55 = por %p53, %p54
      %p56 = scmp.ne.s32.totalorder %s48, %s50
      %p57 = scmp.eq.s32.totalorder %s19, 3
      %p58 = por %p56, %p57
      %p59 = scmp.ne.s32.totalorder %s50, %s51
      %p60 = scmp.eq.s32.totalorder %s19, 0
      %p61 = por %p59, %p60
      %p62 = scmp.ne.s32.totalorder %s50, %s51
      %p63 = scmp.eq.s32.totalorder %s20, 3
      %p64 = por %p62, %p63
      %p66 = scmp.ne.s32.totalorder %s51, %s65
      %p67 = scmp.eq.s32.totalorder %s20, 0
      %p68 = por %p66, %p67
      %s70 = sadd.s32 %s69, 1
      %p73 = scmp.eq.s32.totalorder %s14, 3
      %p74 = scmp.ne.s32.totalorder %s69, %s71
      %p75 = scmp.eq.s32.totalorder %s14, 0
      %p76 = por %p74, %p75
      %p77 = scmp.ne.s32.totalorder %s69, %s71
      %p78 = scmp.eq.s32.totalorder %s19, 3
      %p79 = por %p77, %p78
      %p80 = scmp.ne.s32.totalorder %s71, %s72
      %p81 = scmp.eq.s32.totalorder %s19, 0
      %p82 = por %p80, %p81
      %p83 = scmp.ne.s32.totalorder %s71, %s72
      %p84 = scmp.eq.s32.totalorder %s20, 3
      %p85 = por %p83, %p84
      %p87 = scmp.ne.s32.totalorder %s72, %s86
      %p88 = scmp.eq.s32.totalorder %s20, 0
      %p89 = por %p87, %p88
      %s91 = sadd.s32 %s90, 1
      %p94 = scmp.eq.s32.totalorder %s14, 3
      %p95 = scmp.ne.s32.totalorder %s90, %s92
      %p96 = scmp.eq.s32.totalorder %s14, 0
      %p97 = por %p95, %p96
      %p98 = scmp.ne.s32.totalorder %s90, %s92
      %p99 = scmp.eq.s32.totalorder %s19, 3
      %p100 = por %p98, %p99
      %p101 = scmp.ne.s32.totalorder %s92, %s93
      %p102 = scmp.eq.s32.totalorder %s19, 0
      %p103 = por %p101, %p102
      %p104 = scmp.ne.s32.totalorder %s92, %s93
      %p105 = scmp.eq.s32.totalorder %s20, 3
      %p106 = por %p104, %p105
      %p108 = scmp.ne.s32.totalorder %s93, %s107
      %p109 = scmp.eq.s32.totalorder %s20, 0
      %p110 = por %p108, %p109
      %s112 = sadd.s32 %s111, 1
      %p115 = scmp.eq.s32.totalorder %s14, 3
      %p116 = scmp.ne.s32.totalorder %s111, %s113
      %p117 = scmp.eq.s32.totalorder %s14, 0
      %p118 = por %p116, %p117
      %p119 = scmp.ne.s32.totalorder %s111, %s113
      %p120 = scmp.eq.s32.totalorder %s19, 3
      %p121 = por %p119, %p120
      %p122 = scmp.ne.s32.totalorder %s113, %s114
      %p123 = scmp.eq.s32.totalorder %s19, 0
      %p124 = por %p122, %p123
      %p125 = scmp.ne.s32.totalorder %s113, %s114
      %p126 = scmp.eq.s32.totalorder %s20, 3
      %p127 = por %p125, %p126
      %p129 = scmp.ne.s32.totalorder %s114, %s128
      %p130 = scmp.eq.s32.totalorder %s20, 0
      %p131 = por %p129, %p130
      %s132 = ssub.s32 %s14, %s21
      %p133 = scmp.eq.s32.totalorder %s132, 0
      %s135 = sadd.s32 %s134, 1
      %s136 = scalar_select %p133, %s134, %s135
      %p139 = pneg %p133
      %p140 = scmp.eq.s32.totalorder %s14, 3
      %p141 = por %p139, %p140
      %p142 = scmp.ne.s32.totalorder %s134, %s137
      %p143 = scmp.eq.s32.totalorder %s14, 0
      %p144 = por %p142, %p143
      %p145 = scmp.ne.s32.totalorder %s134, %s137
      %p146 = scmp.eq.s32.totalorder %s19, 3
      %p147 = por %p145, %p146
      %p148 = scmp.ne.s32.totalorder %s137, %s138
      %p149 = scmp.eq.s32.totalorder %s19, 0
      %p150 = por %p148, %p149
      %p151 = scmp.ne.s32.totalorder %s137, %s138
      %p152 = scmp.eq.s32.totalorder %s20, 3
      %p153 = por %p151, %p152
      %p155 = scmp.ne.s32.totalorder %s138, %s154
      %p156 = scmp.eq.s32.totalorder %s20, 0
      %p157 = por %p155, %p156
      %p158 = scmp.le.s32.totalorder 1, %s14
      %p159 = scmp.lt.s32.totalorder %s14, 5
      %p160 = pnand %p158, %p159
      %p161 = pneg %p160
      // Predicated region
      $region9: #{_homo_pallas.1} parent=5 // pred_check
        _
      $region10: #{_homo_pallas.1} parent=5 // pred_check_branch
        %163 = sbr.rel (%p160) target = $region12
      $region11: #{_homo_pallas.1} parent=5 // pred_region
        %s164 = ssub.s32 %s14, 1
        // Predicated region
        $region13: #{_homo_pallas.1} parent=11 // pred_check
          %p165 = pneg %p61
        $region14: #{_homo_pallas.1} parent=11 // pred_check_branch
          %167 = sbr.rel (%p165) target = $region16
        $region15: #{_homo_pallas.1} parent=11 // pred_region
          _
        $region16: #{_homo_pallas.1} parent=11 // pred_fallthru
          _
        // Predicated region
        $region17: #{_homo_pallas.1} parent=11 // pred_check
          %p168 = pneg %p82
        $region18: #{_homo_pallas.1} parent=11 // pred_check_branch
          %170 = sbr.rel (%p168) target = $region20
        $region19: #{_homo_pallas.1} parent=11 // pred_region
          _
        $region20: #{_homo_pallas.1} parent=11 // pred_fallthru
          _
        // Predicated region
        $region21: #{_homo_pallas.1} parent=11 // pred_check
          %p171 = pneg %p103
        $region22: #{_homo_pallas.1} parent=11 // pred_check_branch
          %173 = sbr.rel (%p171) target = $region24
        $region23: #{_homo_pallas.1} parent=11 // pred_region
          _
        $region24: #{_homo_pallas.1} parent=11 // pred_fallthru
          _
        // Predicated region
        $region25: #{_homo_pallas.1} parent=11 // pred_check
          %p174 = pneg %p124
        $region26: #{_homo_pallas.1} parent=11 // pred_check_branch
          %176 = sbr.rel (%p174) target = $region28
        $region27: #{_homo_pallas.1} parent=11 // pred_region
          _
        $region28: #{_homo_pallas.1} parent=11 // pred_fallthru
          _
      $region12: #{_homo_pallas.1} parent=5 // pred_fallthru
        _
      %p177 = scmp.lt.s32.totalorder %s14, 4
      // Predicated region
      $region29: #{_homo_pallas.1} parent=5 // pred_check
        %p178 = pneg %p177
      $region30: #{_homo_pallas.1} parent=5 // pred_check_branch
        %180 = sbr.rel (%p178) target = $region32
      $region31: #{_homo_pallas.1} parent=5 // pred_region
        // Predicated region
        $region33: #{_homo_pallas.1} parent=31 // pred_check
          %p181 = pneg %p34
        $region34: #{_homo_pallas.1} parent=31 // pred_check_branch
          %183 = sbr.rel (%p181) target = $region36
        $region35: #{_homo_pallas.1} parent=31 // pred_region
          %s184 = smul.u32 32, %s14
          %p185 = scmp.lt.s32.totalorder %s184, 127
          %s186 = scalar_select %p185, %s184, 127
          %s187 = smul.addr %s186, 8
          %s188 = scalar_lea.vmem %s0, %s187
          %s189 = smul.u32 32, %s14
        $region36: #{_homo_pallas.1} parent=31 // pred_fallthru
          _
      $region32: #{_homo_pallas.1} parent=5 // pred_fallthru
        _
      %p190 = scmp.le.s32.totalorder 1, %s14
      %p191 = scmp.lt.s32.totalorder %s14, 5
      %p192 = pnand %p190, %p191
      %p193 = pneg %p192
      // Predicated region
      $region37: #{_homo_pallas.1} parent=5 // pred_check
        _
      $region38: #{_homo_pallas.1} parent=5 // pred_check_branch
        %195 = sbr.rel (%p192) target = $region40
      $region39: #{_homo_pallas.1} parent=5 // pred_region
        %s196 = ssub.s32 %s14, 1
        %s197 = smul.u32 32, %s19
        %p198 = scmp.lt.s32.totalorder %s197, 127
        %s199 = scalar_select %p198, %s197, 127
        %s200 = smul.addr %s199, 8
        %s201 = scalar_lea.vmem %s0, %s200
        %p202 = pneg %p40
        %p203 = pneg %p37
        %p204 = pneg %p61
        %p205 = pneg %p58
        %p206 = pneg %p82
        %p207 = pneg %p79
        %p208 = pneg %p103
        %p209 = pneg %p100
        %p210 = pneg %p124
        %p211 = pneg %p121
        %p212 = pneg %p150
        %p213 = pneg %p147
        %s214 = sand.u32 %s137, 1
        %s215 = scalar_lea.sflag [#allocation3], %s214
        %s216 = sand.u32 %s137, 1
        %s217 = smul.addr %s216, 8
        %s218 = scalar_lea.vmem [#allocation2], %s217
        %s219 = smul.u32 32, %s19
        %p220 = scmp.lt.s32.totalorder %s219, 127
        %s221 = scalar_select %p220, %s219, 127
        %s222 = smul.addr %s221, 8
        %s223 = scalar_lea.vmem %s0, %s222
        %s224 = smul.u32 32, %s19
        %s225 = smul.u32 2, %s19
        %v227 = vld [vmem:[%s4] sm:$0xff]
        %v228 = vld [vmem:[%s4 + $0x8] sm:$0xff]
        %v229 = vld [vmem:[%s4 + $0x10] sm:$0xff]
        %v230 = vld [vmem:[%s4 + $0x18] sm:$0xff]
        %v231 = vld [vmem:[%s223] sm:$0xff]
        %v232 = vld [vmem:[%s223 + $0x8] sm:$0xff]
        %v233 = vld [vmem:[%s223 + $0x10] sm:$0xff]
        %v234 = vld [vmem:[%s223 + $0x18] sm:$0xff]
        %v235 = vld [vmem:[%s223 + $0x20] sm:$0xff]
        %v236 = vld [vmem:[%s223 + $0x28] sm:$0xff]
        %v237 = vld [vmem:[%s223 + $0x30] sm:$0xff]
        %v238 = vld [vmem:[%s223 + $0x38] sm:$0xff]
        %v239 = vld [vmem:[%s223 + $0x40] sm:$0xff]
        %v240 = vld [vmem:[%s223 + $0x48] sm:$0xff]
        %v241 = vld [vmem:[%s223 + $0x50] sm:$0xff]
        %v242 = vld [vmem:[%s223 + $0x58] sm:$0xff]
        %v243 = vld [vmem:[%s223 + $0x60] sm:$0xff]
        %v244 = vld [vmem:[%s223 + $0x68] sm:$0xff]
        %v245 = vld [vmem:[%s223 + $0x70] sm:$0xff]
        %v246 = vld [vmem:[%s223 + $0x78] sm:$0xff]
        %v247 = vld [vmem:[%s223 + $0x80] sm:$0xff]
        %v248 = vld [vmem:[%s223 + $0x88] sm:$0xff]
        %v249 = vld [vmem:[%s223 + $0x90] sm:$0xff]
        %v250 = vld [vmem:[%s223 + $0x98] sm:$0xff]
        %v251 = vld [vmem:[%s223 + $0xa0] sm:$0xff]
        %v252 = vld [vmem:[%s223 + $0xa8] sm:$0xff]
        %v253 = vld [vmem:[%s223 + $0xb0] sm:$0xff]
        %v254 = vld [vmem:[%s223 + $0xb8] sm:$0xff]
        %v255 = vld [vmem:[%s223 + $0xc0] sm:$0xff]
        %v256 = vld [vmem:[%s223 + $0xc8] sm:$0xff]
        %v257 = vld [vmem:[%s223 + $0xd0] sm:$0xff]
        %v258 = vld [vmem:[%s223 + $0xd8] sm:$0xff]
        %v259 = vld [vmem:[%s223 + $0xe0] sm:$0xff]
        %v260 = vld [vmem:[%s223 + $0xe8] sm:$0xff]
        %v261 = vld [vmem:[%s223 + $0xf0] sm:$0xff]
        %v262 = vld [vmem:[%s223 + $0xf8] sm:$0xff]
        %v263 = vpack.c.bf16 %v232, %v231
        %v264 = vpack.c.bf16 %v234, %v233
        %v265 = vpack.c.bf16 %v236, %v235
        %v266 = vpack.c.bf16 %v238, %v237
        %v267 = vpack.c.bf16 %v240, %v239
        %v268 = vpack.c.bf16 %v242, %v241
        %v269 = vpack.c.bf16 %v244, %v243
        %v270 = vpack.c.bf16 %v246, %v245
        %v271 = vpack.c.bf16 %v248, %v247
        %v272 = vpack.c.bf16 %v250, %v249
        %v273 = vpack.c.bf16 %v252, %v251
        %v274 = vpack.c.bf16 %v254, %v253
        %v275 = vpack.c.bf16 %v256, %v255
        %v276 = vpack.c.bf16 %v258, %v257
        %v277 = vpack.c.bf16 %v260, %v259
        %v278 = vpack.c.bf16 %v262, %v261
        %v279 = vld [vmem:[%s1] sm:$0xf]
        %v280 = vld [vmem:[%s1 + $0x4] sm:$0xf]
        %v281 = vld [vmem:[%s1 + $0x8] sm:$0xf]
        %v282 = vld [vmem:[%s1 + $0xc] sm:$0xf]
        %284 = vset.pattern.permute.xlu0 0
        %285 = vperm.xlu0 %284, %v227
        %v286 = vpop.permute.xlu0 %285
        %289 = vset.pattern.permute.xlu0 0
        %290 = vperm.xlu0 %289, %v228
        %v291 = vpop.permute.xlu0 %290
        %294 = vset.pattern.permute.xlu0 0
        %295 = vperm.xlu0 %294, %v229
        %v296 = vpop.permute.xlu0 %295
        %299 = vset.pattern.permute.xlu0 0
        %300 = vperm.xlu0 %299, %v230
        %v301 = vpop.permute.xlu0 %300
        %v307 = vunpack.c.l.b16 %v279
        %v308 = vunpack.c.l.b16 %v280
        %v309 = vunpack.c.l.b16 %v281
        %v310 = vunpack.c.l.b16 %v282
        %v311 = vpack.c.b16 %v308, %v307
        %v312 = vpack.c.b16 %v310, %v309
        %vm313 = vcmask 64512
        %v315 = vsel %vm313, %v311, 0
        %v318 = vsel %vm313, %v312, 0
        %v321 = vsel %vm313, %v263, 0
        %v324 = vsel %vm313, %v264, 0
        %v327 = vsel %vm313, %v265, 0
        %v330 = vsel %vm313, %v266, 0
        %v333 = vsel %vm313, %v267, 0
        %v336 = vsel %vm313, %v268, 0
        %v339 = vsel %vm313, %v269, 0
        %v342 = vsel %vm313, %v270, 0
        %v345 = vsel %vm313, %v271, 0
        %v348 = vsel %vm313, %v272, 0
        %v351 = vsel %vm313, %v273, 0
        %v354 = vsel %vm313, %v274, 0
        %v357 = vsel %vm313, %v275, 0
        %v360 = vsel %vm313, %v276, 0
        %v363 = vsel %vm313, %v277, 0
        %v366 = vsel %vm313, %v278, 0
        %368 = vmatprep.subr.bf16.mxu0 0
        %369 = vmatpush1.bf16.xpose.msra.mxu0 %v321
        %370 = vmatprep.subr.bf16.mxu0 0
        %371 = vmatpush1.bf16.xpose.msra.mxu0 %v324
        %372 = vmatprep.subr.bf16.mxu0 0
        %373 = vmatpush1.bf16.xpose.msra.mxu0 %v327
        %374 = vmatprep.subr.bf16.mxu0 0
        %375 = vmatpush1.bf16.xpose.msra.mxu0 %v330
        %376 = vmatprep.subr.bf16.mxu0 0
        %377 = vmatpush1.bf16.xpose.msra.mxu0 %v333
        %378 = vmatprep.subr.bf16.mxu0 0
        %379 = vmatpush1.bf16.xpose.msra.mxu0 %v336
        %380 = vmatprep.subr.bf16.mxu0 0
        %381 = vmatpush1.bf16.xpose.msra.mxu0 %v339
        %382 = vmatprep.subr.bf16.mxu0 0
        %383 = vmatpush1.bf16.xpose.msra.mxu0 %v342
        %384 = vmatprep.subr.bf16.mxu0 0
        %385 = vmatpush1.bf16.xpose.msra.mxu0 %v345
        %386 = vmatprep.subr.bf16.mxu0 0
        %387 = vmatpush1.bf16.xpose.msra.mxu0 %v348
        %388 = vmatprep.subr.bf16.mxu0 0
        %389 = vmatpush1.bf16.xpose.msra.mxu0 %v351
        %390 = vmatprep.subr.bf16.mxu0 0
        %391 = vmatpush1.bf16.xpose.msra.mxu0 %v354
        %392 = vmatprep.subr.bf16.mxu0 0
        %393 = vmatpush1.bf16.xpose.msra.mxu0 %v357
        %394 = vmatprep.subr.bf16.mxu0 0
        %395 = vmatpush1.bf16.xpose.msra.mxu0 %v360
        %396 = vmatprep.subr.bf16.mxu0 0
        %397 = vmatpush1.bf16.xpose.msra.mxu0 %v363
        %398 = vmatprep.subr.bf16.mxu0 0
        %399 = vmatpush1.bf16.xpose.msra.mxu0 %v366
        %400 = vmatprep.mubr.bf16.mxu0 0
        %401 = vmatmul.mubr.bf16.gmra.mrb[0].mxu0 %v315
        %v402 = vpop.f32.mrb[0].mxu0
        %v403 = vadd.f32 %v286, %v402
        %v404 = vpop.f32.mrb[0].mxu0
        %v405 = vadd.f32 %v286, %v404
        %v406 = vpop.f32.mrb[0].mxu0
        %v407 = vadd.f32 %v291, %v406
        %v408 = vpop.f32.mrb[0].mxu0
        %v409 = vadd.f32 %v291, %v408
        %410 = vmatprep.mubr.bf16.mxu0 0
        %411 = vmatmul.mubr.bf16.gmra.mrb[0].mxu0 %v318
        %v412 = vpop.f32.mrb[0].mxu0
        %v413 = vadd.f32 %v296, %v412
        %v414 = vpop.f32.mrb[0].mxu0
        %v415 = vadd.f32 %v296, %v414
        %v416 = vpop.f32.mrb[0].mxu0
        %v417 = vadd.f32 %v301, %v416
        %v418 = vpop.f32.mrb[0].mxu0
        %v419 = vadd.f32 %v301, %v418
        %420 = vdwg.mxu0
        %v421 = vtanh.pop %v403
        %v422 = vtanh.pop %v405
        %v423 = vtanh.pop %v407
        %v424 = vtanh.pop %v409
        %v425 = vtanh.pop %v413
        %v426 = vtanh.pop %v415
        %v427 = vtanh.pop %v417
        %v428 = vtanh.pop %v419
        %v429 = vld [vmem:[%s2] sm:$0xf]
        %v430 = vld [vmem:[%s2 + $0x4] sm:$0xf]
        %v431 = vld [vmem:[%s2 + $0x8] sm:$0xf]
        %v432 = vld [vmem:[%s2 + $0xc] sm:$0xf]
        %v433 = vpack.c.bf16 %v423, %v421
        %v434 = vpack.c.bf16 %v424, %v422
        %v435 = vpack.c.bf16 %v427, %v425
        %v436 = vpack.c.bf16 %v428, %v426
        %437 = vset.pattern.permute.xlu0 1
        %438 = vperm.xlu0 %437, %v227
        %v439 = vpop.permute.xlu0 %438
        %441 = vset.pattern.permute.xlu0 1
        %442 = vperm.xlu0 %441, %v228
        %v443 = vpop.permute.xlu0 %442
        %445 = vset.pattern.permute.xlu0 1
        %446 = vperm.xlu0 %445, %v229
        %v447 = vpop.permute.xlu0 %446
        %449 = vset.pattern.permute.xlu0 1
        %450 = vperm.xlu0 %449, %v230
        %v451 = vpop.permute.xlu0 %450
        %v457 = vunpack.c.l.b16 %v429
        %v458 = vunpack.c.l.b16 %v430
        %v459 = vunpack.c.l.b16 %v431
        %v460 = vunpack.c.l.b16 %v432
        %v461 = vpack.c.b16 %v458, %v457
        %v462 = vpack.c.b16 %v460, %v459
        %vm463 = vcmask 261120
        %v465 = vsel %vm463, %v461, 0
        %v468 = vsel %vm463, %v462, 0
        %470 = vmatprep.subr.bf16.mxu0 %v434
        %471 = vmatpush1.bf16.msra.mxu0 %v433
        %472 = vmatprep.subr.bf16.mxu0 %v436
        %473 = vmatpush1.bf16.msra.mxu0 %v435
        %474 = vmatprep.subr.bf16.mxu0 0
        %475 = vmatpush1.bf16.msra.mxu0 0
        %476 = vmatprep.subr.bf16.mxu0 0
        %477 = vmatpush1.bf16.msra.mxu0 0
        %478 = vmatprep.subr.bf16.mxu0 0
        %479 = vmatpush1.bf16.msra.mxu0 0
        %480 = vmatprep.subr.bf16.mxu0 0
        %481 = vmatpush1.bf16.msra.mxu0 0
        %482 = vmatprep.subr.bf16.mxu0 0
        %483 = vmatpush1.bf16.msra.mxu0 0
        %484 = vmatprep.subr.bf16.mxu0 0
        %485 = vmatpush1.bf16.msra.mxu0 0
        %486 = vmatprep.subr.bf16.mxu0 0
        %487 = vmatpush1.bf16.msra.mxu0 0
        %488 = vmatprep.subr.bf16.mxu0 0
        %489 = vmatpush1.bf16.msra.mxu0 0
        %490 = vmatprep.subr.bf16.mxu0 0
        %491 = vmatpush1.bf16.msra.mxu0 0
        %492 = vmatprep.subr.bf16.mxu0 0
        %493 = vmatpush1.bf16.msra.mxu0 0
        %494 = vmatprep.subr.bf16.mxu0 0
        %495 = vmatpush1.bf16.msra.mxu0 0
        %496 = vmatprep.subr.bf16.mxu0 0
        %497 = vmatpush1.bf16.msra.mxu0 0
        %498 = vmatprep.subr.bf16.mxu0 0
        %499 = vmatpush1.bf16.msra.mxu0 0
        %500 = vmatprep.subr.bf16.mxu0 0
        %501 = vmatpush1.bf16.msra.mxu0 0
        %502 = vmatprep.mubr.bf16.mxu0 0
        %503 = vmatmul.mubr.bf16.gmra.mrb[0].mxu0 %v465
        %v504 = vpop.f32.mrb[0].mxu0
        %v505 = vadd.f32 %v439, %v504
        %v506 = vpop.f32.mrb[0].mxu0
        %v507 = vadd.f32 %v439, %v506
        %v508 = vpop.f32.mrb[0].mxu0
        %v509 = vadd.f32 %v443, %v508
        %v510 = vpop.f32.mrb[0].mxu0
        %v511 = vadd.f32 %v443, %v510
        %512 = vmatprep.mubr.bf16.mxu0 0
        %513 = vmatmul.mubr.bf16.gmra.mrb[0].mxu0 %v468
        %v514 = vpop.f32.mrb[0].mxu0
        %v515 = vadd.f32 %v447, %v514
        %v516 = vpop.f32.mrb[0].mxu0
        %v517 = vadd.f32 %v447, %v516
        %v518 = vpop.f32.mrb[0].mxu0
        %v519 = vadd.f32 %v451, %v518
        %v520 = vpop.f32.mrb[0].mxu0
        %v521 = vadd.f32 %v451, %v520
        %522 = vdwg.mxu0
        %v523 = vtanh.pop %v505
        %v524 = vtanh.pop %v507
        %v525 = vtanh.pop %v509
        %v526 = vtanh.pop %v511
        %v527 = vtanh.pop %v515
        %v528 = vtanh.pop %v517
        %v529 = vtanh.pop %v519
        %v530 = vtanh.pop %v521
        %s531 = scalar_lea.vmem %s2, 16
        %v532 = vld [vmem:[%s531] sm:$0xf]
        %v533 = vld [vmem:[%s531 + $0x4] sm:$0xf]
        %v534 = vld [vmem:[%s531 + $0x8] sm:$0xf]
        %v535 = vld [vmem:[%s531 + $0xc] sm:$0xf]
        %v536 = vpack.c.bf16 %v525, %v523
        %v537 = vpack.c.bf16 %v526, %v524
        %v538 = vpack.c.bf16 %v529, %v527
        %v539 = vpack.c.bf16 %v530, %v528
        %540 = vset.pattern.permute.xlu0 2
        %541 = vperm.xlu0 %540, %v227
        %v542 = vpop.permute.xlu0 %541
        %544 = vset.pattern.permute.xlu0 2
        %545 = vperm.xlu0 %544, %v228
        %v546 = vpop.permute.xlu0 %545
        %548 = vset.pattern.permute.xlu0 2
        %549 = vperm.xlu0 %548, %v229
        %v550 = vpop.permute.xlu0 %549
        %552 = vset.pattern.permute.xlu0 2
        %553 = vperm.xlu0 %552, %v230
        %v554 = vpop.permute.xlu0 %553
        %v560 = vunpack.c.l.b16 %v532
        %v561 = vunpack.c.l.b16 %v533
        %v562 = vunpack.c.l.b16 %v534
        %v563 = vunpack.c.l.b16 %v535
        %v564 = vpack.c.b16 %v561, %v560
        %v565 = vpack.c.b16 %v563, %v562
        %v567 = vsel %vm463, %v564, 0
        %v570 = vsel %vm463, %v565, 0
        %572 = vmatprep.subr.bf16.mxu0 %v537
        %573 = vmatpush1.bf16.msra.mxu0 %v536
        %574 = vmatprep.subr.bf16.mxu0 %v539
        %575 = vmatpush1.bf16.msra.mxu0 %v538
        %576 = vmatprep.subr.bf16.mxu0 0
        %577 = vmatpush1.bf16.msra.mxu0 0
        %578 = vmatprep.subr.bf16.mxu0 0
        %579 = vmatpush1.bf16.msra.mxu0 0
        %580 = vmatprep.subr.bf16.mxu0 0
        %581 = vmatpush1.bf16.msra.mxu0 0
        %582 = vmatprep.subr.bf16.mxu0 0
        %583 = vmatpush1.bf16.msra.mxu0 0
        %584 = vmatprep.subr.bf16.mxu0 0
        %585 = vmatpush1.bf16.msra.mxu0 0
        %586 = vmatprep.subr.bf16.mxu0 0
        %587 = vmatpush1.bf16.msra.mxu0 0
        %588 = vmatprep.subr.bf16.mxu0 0
        %589 = vmatpush1.bf16.msra.mxu0 0
        %590 = vmatprep.subr.bf16.mxu0 0
        %591 = vmatpush1.bf16.msra.mxu0 0
        %592 = vmatprep.subr.bf16.mxu0 0
        %593 = vmatpush1.bf16.msra.mxu0 0
        %594 = vmatprep.subr.bf16.mxu0 0
        %595 = vmatpush1.bf16.msra.mxu0 0
        %596 = vmatprep.subr.bf16.mxu0 0
        %597 = vmatpush1.bf16.msra.mxu0 0
        %598 = vmatprep.subr.bf16.mxu0 0
        %599 = vmatpush1.bf16.msra.mxu0 0
        %600 = vmatprep.subr.bf16.mxu0 0
        %601 = vmatpush1.bf16.msra.mxu0 0
        %602 = vmatprep.subr.bf16.mxu0 0
        %603 = vmatpush1.bf16.msra.mxu0 0
        %604 = vmatprep.mubr.bf16.mxu0 0
        %605 = vmatmul.mubr.bf16.gmra.mrb[0].mxu0 %v567
        %v606 = vpop.f32.mrb[0].mxu0
        %v607 = vadd.f32 %v542, %v606
        %v608 = vpop.f32.mrb[0].mxu0
        %v609 = vadd.f32 %v542, %v608
        %v610 = vpop.f32.mrb[0].mxu0
        %v611 = vadd.f32 %v546, %v610
        %v612 = vpop.f32.mrb[0].mxu0
        %v613 = vadd.f32 %v546, %v612
        %614 = vmatprep.mubr.bf16.mxu0 0
        %615 = vmatmul.mubr.bf16.gmra.mrb[0].mxu0 %v570
        %v616 = vpop.f32.mrb[0].mxu0
        %v617 = vadd.f32 %v550, %v616
        %v618 = vpop.f32.mrb[0].mxu0
        %v619 = vadd.f32 %v550, %v618
        %v620 = vpop.f32.mrb[0].mxu0
        %v621 = vadd.f32 %v554, %v620
        %v622 = vpop.f32.mrb[0].mxu0
        %v623 = vadd.f32 %v554, %v622
        %624 = vdwg.mxu0
        %v625 = vtanh.pop %v607
        %v626 = vtanh.pop %v609
        %v627 = vtanh.pop %v611
        %v628 = vtanh.pop %v613
        %v629 = vtanh.pop %v617
        %v630 = vtanh.pop %v619
        %v631 = vtanh.pop %v621
        %v632 = vtanh.pop %v623
        %v633 = vadd.f32 %v625, %v421
        %v634 = vadd.f32 %v626, %v422
        %v635 = vadd.f32 %v627, %v423
        %v636 = vadd.f32 %v628, %v424
        %v637 = vadd.f32 %v629, %v425
        %v638 = vadd.f32 %v630, %v426
        %v639 = vadd.f32 %v631, %v427
        %v640 = vadd.f32 %v632, %v428
        %s641 = scalar_lea.vmem %s2, 32
        %v642 = vld [vmem:[%s641] sm:$0xf]
        %v643 = vld [vmem:[%s641 + $0x4] sm:$0xf]
        %v644 = vld [vmem:[%s641 + $0x8] sm:$0xf]
        %v645 = vld [vmem:[%s641 + $0xc] sm:$0xf]
        %v646 = vpack.c.bf16 %v635, %v633
        %v647 = vpack.c.bf16 %v636, %v634
        %v648 = vpack.c.bf16 %v639, %v637
        %v649 = vpack.c.bf16 %v640, %v638
        %650 = vset.pattern.permute.xlu0 3
        %651 = vperm.xlu0 %650, %v227
        %v652 = vpop.permute.xlu0 %651
        %654 = vset.pattern.permute.xlu0 3
        %655 = vperm.xlu0 %654, %v228
        %v656 = vpop.permute.xlu0 %655
        %658 = vset.pattern.permute.xlu0 3
        %659 = vperm.xlu0 %658, %v229
        %v660 = vpop.permute.xlu0 %659
        %662 = vset.pattern.permute.xlu0 3
        %663 = vperm.xlu0 %662, %v230
        %v664 = vpop.permute.xlu0 %663
        %v670 = vunpack.c.l.b16 %v642
        %v671 = vunpack.c.l.b16 %v643
        %v672 = vunpack.c.l.b16 %v644
        %v673 = vunpack.c.l.b16 %v645
        %v674 = vpack.c.b16 %v671, %v670
        %v675 = vpack.c.b16 %v673, %v672
        %v677 = vsel %vm463, %v674, 0
        %v680 = vsel %vm463, %v675, 0
        %682 = vmatprep.subr.bf16.mxu0 %v647
        %683 = vmatpush1.bf16.msra.mxu0 %v646
        %684 = vmatprep.subr.bf16.mxu0 %v649
        %685 = vmatpush1.bf16.msra.mxu0 %v648
        %686 = vmatprep.subr.bf16.mxu0 0
        %687 = vmatpush1.bf16.msra.mxu0 0
        %688 = vmatprep.subr.bf16.mxu0 0
        %689 = vmatpush1.bf16.msra.mxu0 0
        %690 = vmatprep.subr.bf16.mxu0 0
        %691 = vmatpush1.bf16.msra.mxu0 0
        %692 = vmatprep.subr.bf16.mxu0 0
        %693 = vmatpush1.bf16.msra.mxu0 0
        %694 = vmatprep.subr.bf16.mxu0 0
        %695 = vmatpush1.bf16.msra.mxu0 0
        %696 = vmatprep.subr.bf16.mxu0 0
        %697 = vmatpush1.bf16.msra.mxu0 0
        %698 = vmatprep.subr.bf16.mxu0 0
        %699 = vmatpush1.bf16.msra.mxu0 0
        %700 = vmatprep.subr.bf16.mxu0 0
        %701 = vmatpush1.bf16.msra.mxu0 0
        %702 = vmatprep.subr.bf16.mxu0 0
        %703 = vmatpush1.bf16.msra.mxu0 0
        %704 = vmatprep.subr.bf16.mxu0 0
        %705 = vmatpush1.bf16.msra.mxu0 0
        %706 = vmatprep.subr.bf16.mxu0 0
        %707 = vmatpush1.bf16.msra.mxu0 0
        %708 = vmatprep.subr.bf16.mxu0 0
        %709 = vmatpush1.bf16.msra.mxu0 0
        %710 = vmatprep.subr.bf16.mxu0 0
        %711 = vmatpush1.bf16.msra.mxu0 0
        %712 = vmatprep.subr.bf16.mxu0 0
        %713 = vmatpush1.bf16.msra.mxu0 0
        %714 = vmatprep.mubr.bf16.mxu0 0
        %715 = vmatmul.mubr.bf16.gmra.mrb[0].mxu0 %v677
        %v716 = vpop.f32.mrb[0].mxu0
        %v717 = vadd.f32 %v652, %v716
        %v718 = vpop.f32.mrb[0].mxu0
        %v719 = vadd.f32 %v652, %v718
        %v720 = vpop.f32.mrb[0].mxu0
        %v721 = vadd.f32 %v656, %v720
        %v722 = vpop.f32.mrb[0].mxu0
        %v723 = vadd.f32 %v656, %v722
        %724 = vmatprep.mubr.bf16.mxu0 0
        %725 = vmatmul.mubr.bf16.gmra.mrb[0].mxu0 %v680
        %v726 = vpop.f32.mrb[0].mxu0
        %v727 = vadd.f32 %v660, %v726
        %v728 = vpop.f32.mrb[0].mxu0
        %v729 = vadd.f32 %v660, %v728
        %v730 = vpop.f32.mrb[0].mxu0
        %v731 = vadd.f32 %v664, %v730
        %v732 = vpop.f32.mrb[0].mxu0
        %v733 = vadd.f32 %v664, %v732
        %734 = vdwg.mxu0
        %v735 = vtanh.pop %v717
        %v736 = vtanh.pop %v719
        %v737 = vtanh.pop %v721
        %v738 = vtanh.pop %v723
        %v739 = vtanh.pop %v727
        %v740 = vtanh.pop %v729
        %v741 = vtanh.pop %v731
        %v742 = vtanh.pop %v733
        %v743 = vadd.f32 %v735, %v523
        %v744 = vadd.f32 %v736, %v524
        %v745 = vadd.f32 %v737, %v525
        %v746 = vadd.f32 %v738, %v526
        %v747 = vadd.f32 %v739, %v527
        %v748 = vadd.f32 %v740, %v528
        %v749 = vadd.f32 %v741, %v529
        %v750 = vadd.f32 %v742, %v530
        %v751 = vld [vmem:[%s3] sm:$0x3]
        %v752 = vpack.c.bf16 %v745, %v743
        %v753 = vpack.c.bf16 %v746, %v744
        %v754 = vpack.c.bf16 %v749, %v747
        %v755 = vpack.c.bf16 %v750, %v748
        %756 = vset.pattern.permute.xlu0 4
        %757 = vperm.xlu0 %756, %v227
        %v758 = vpop.permute.xlu0 %757
        %v761 = vsel %vm463, %v751, 0
        %763 = vmatprep.subr.bf16.mxu0 %v753
        %764 = vmatpush1.bf16.msra.mxu0 %v752
        %765 = vmatprep.subr.bf16.mxu0 %v755
        %766 = vmatpush1.bf16.msra.mxu0 %v754
        %767 = vmatprep.subr.bf16.mxu0 0
        %768 = vmatpush1.bf16.msra.mxu0 0
        %769 = vmatprep.subr.bf16.mxu0 0
        %770 = vmatpush1.bf16.msra.mxu0 0
        %771 = vmatprep.subr.bf16.mxu0 0
        %772 = vmatpush1.bf16.msra.mxu0 0
        %773 = vmatprep.subr.bf16.mxu0 0
        %774 = vmatpush1.bf16.msra.mxu0 0
        %775 = vmatprep.subr.bf16.mxu0 0
        %776 = vmatpush1.bf16.msra.mxu0 0
        %777 = vmatprep.subr.bf16.mxu0 0
        %778 = vmatpush1.bf16.msra.mxu0 0
        %779 = vmatprep.subr.bf16.mxu0 0
        %780 = vmatpush1.bf16.msra.mxu0 0
        %781 = vmatprep.subr.bf16.mxu0 0
        %782 = vmatpush1.bf16.msra.mxu0 0
        %783 = vmatprep.subr.bf16.mxu0 0
        %784 = vmatpush1.bf16.msra.mxu0 0
        %785 = vmatprep.subr.bf16.mxu0 0
        %786 = vmatpush1.bf16.msra.mxu0 0
        %787 = vmatprep.subr.bf16.mxu0 0
        %788 = vmatpush1.bf16.msra.mxu0 0
        %789 = vmatprep.subr.bf16.mxu0 0
        %790 = vmatpush1.bf16.msra.mxu0 0
        %791 = vmatprep.subr.bf16.mxu0 0
        %792 = vmatpush1.bf16.msra.mxu0 0
        %793 = vmatprep.subr.bf16.mxu0 0
        %794 = vmatpush1.bf16.msra.mxu0 0
        %795 = vmatprep.mubr.bf16.mxu0 0
        %796 = vmatmul.mubr.bf16.gmra.mrb[0].mxu0 %v761
        %v797 = vpop.f32.mrb[0].mxu0
        %v798 = vadd.f32 %v758, %v797
        %v799 = vpop.f32.mrb[0].mxu0
        %v800 = vadd.f32 %v758, %v799
        %v801 = vpop.f32.mrb[0].mxu0
        %v802 = vpop.f32.mrb[0].mxu0
        %803 = vdwg.mxu0
        %v806 = vcombine.low %v798, %v800
        %808 = vst [vmem:[%s218] sm:$0xff] %v806
        %s809 = sand.u32 %s137, 1
        %s810 = scalar_lea.sflag [#allocation3], %s809
        %s811 = sand.u32 %s137, 1
        %s812 = smul.addr %s811, 8
        %s813 = scalar_lea.vmem [#allocation2], %s812
        // Predicated region
        $region41: #{_homo_pallas.1} parent=39 // pred_check
          %p814 = pneg %p147
        $region42: #{_homo_pallas.1} parent=39 // pred_check_branch
          %816 = sbr.rel (%p814) target = $region44
        $region43: #{_homo_pallas.1} parent=39 // pred_region
          %s817 = smul.u32 2, %s19
          %s819 = ssub.s32 128, 128
          %820 = vsyncadd %s810, %s819
          %s821 = smul.addr %s817, 64
          %s822 = scalar_lea.hbm %s5, %s821
          %s824 = sshll.u32 %s813, 4
          %s825 = int_to_ptr.vmem [resolvable:$true] %s824
          %827 = dma.vmem_to_hbm [thread:$0]  %s825, 128, %s822, %s810
        $region44: #{_homo_pallas.1} parent=39 // pred_fallthru
          _
      $region40: #{_homo_pallas.1} parent=5 // pred_fallthru
        _
      %p828 = scmp.le.s32.totalorder 2, %s14
      // Predicated region
      $region45: #{_homo_pallas.1} parent=5 // pred_check
        %p829 = pneg %p828
      $region46: #{_homo_pallas.1} parent=5 // pred_check_branch
        %831 = sbr.rel (%p829) target = $region48
      $region47: #{_homo_pallas.1} parent=5 // pred_region
        %s832 = ssub.s32 %s14, 2
        // Predicated region
        $region49: #{_homo_pallas.1} parent=47 // pred_check
          %p833 = pneg %p153
        $region50: #{_homo_pallas.1} parent=47 // pred_check_branch
          %835 = sbr.rel (%p833) target = $region52
        $region51: #{_homo_pallas.1} parent=47 // pred_region
          %s836 = sand.u32 %s138, 1
          %s837 = scalar_lea.sflag [#allocation3], %s836
          %s838 = sand.u32 %s138, 1
          %s839 = smul.addr %s838, 8
          %s840 = scalar_lea.vmem [#allocation2], %s839
          %841 = dma.done %s837, 128
        $region52: #{_homo_pallas.1} parent=47 // pred_fallthru
          _
      $region48: #{_homo_pallas.1} parent=5 // pred_fallthru
        _
    $region6: #{_homo_pallas.1} parent=1 // loop_footer
      %s18 = sadd.s32 1, %s14
    $region7: #{_homo_pallas.1} parent=1 // loop_footer_branch
      %13 = sbr.rel target = $region3
    $region8: #{_homo_pallas.1} parent=1 // loop_exit
      _
    %842 = vsyncpa [#allocation3], 1
    %s843 = scalar_lea.sflag [#allocation3], 1
    %844 = vsyncpa %s843, 1

</llo_original>
